<compile_context>
chip_gen: v7x
topology: tpu7x:2x2x1
jax: 0.10.0
libtpu: 0.0.40
codegen_flags: <defaults>
</compile_context>

<pallas_src>
import functools

import jax
import jax.numpy as jnp
from jax.experimental import pallas as pl
from jax.experimental.pallas import tpu as pltpu


def attention_head_kernel(x_ref, c_ref, wq_ref, bq_ref, wkv_ref, bkv_ref,
                          out_ref, *, scale):
    """Fused Q/(K|V) projections + scaled dot-product + softmax(dim=1) + value
    mix for a tile of B_TILE batch elements."""
    bt, n, dx = x_ref.shape
    _, m, dc = c_ref.shape
    q_size = wq_ref.shape[1]
    cd = wq_ref.dtype                       # MXU input dtype (f32 or bf16)

    # Merge the batch tile into the row dim -> one fat matmul per projection.
    x2 = x_ref[...].reshape(bt * n, dx).astype(cd)       # [bt*N, Dx]
    c2 = c_ref[...].reshape(bt * m, dc).astype(cd)       # [bt*M, Dc]

    # Q projection: [bt*N, Dx] @ [Dx, Q] (+ bias), back to [bt, N, Q].
    q = (jnp.dot(x2, wq_ref[...], preferred_element_type=jnp.float32)
         + bq_ref[...]).reshape(bt, n, q_size)

    # Fused K/V projection: single [bt*M, Dc] @ [Dc, 2Q] matmul, then a
    # lane-aligned split at Q (Q is a multiple of 128).
    kv = (jnp.dot(c2, wkv_ref[...], preferred_element_type=jnp.float32)
          + bkv_ref[...]).reshape(bt, m, 2 * q_size)
    k = kv[:, :, :q_size]                                 # [bt, M, Q]
    v = kv[:, :, q_size:]                                 # [bt, M, Q]

    # scores = q @ k^T / sqrt(Q)  -> [bt, N, M]  (batched contraction)
    s = jax.lax.dot_general(
        q.astype(cd), k.astype(cd),
        dimension_numbers=(((2,), (2,)), ((0,), (0,))),
        preferred_element_type=jnp.float32) * scale

    # torch.softmax(a, dim=1) on [B, N, M] normalizes over the query/N axis,
    # i.e. axis 1 of this [bt, N, M] tile.  Full N lives in one block, so the
    # reduction is exact.  Softmax math stays in f32; divide goes to the EUP.
    s_max = jnp.max(s, axis=1, keepdims=True)
    e = jnp.exp(s - s_max)
    denom = jnp.sum(e, axis=1, keepdims=True)
    p = e * pl.reciprocal(denom, approx=True)

    # out = softmax(a) @ v  -> [bt, N, Q]  (batched contraction)
    out = jax.lax.dot_general(
        p.astype(cd), v.astype(cd),
        dimension_numbers=(((2,), (1,)), ((0,), (0,))),
        preferred_element_type=jnp.float32)
    out_ref[...] = out.astype(out_ref.dtype)


def init_linear(key, in_features, out_features, dtype=jnp.float32):
    """PyTorch nn.Linear default init (kaiming-uniform, a=sqrt(5))."""
    kw, kb = jax.random.split(key)
    bound = 1.0 / jnp.sqrt(jnp.float32(in_features))
    # Stored PyTorch-style as (out, in); re-laid-out once by prepare_params.
    w = jax.random.uniform(kw, (out_features, in_features), dtype, -bound, bound)
    b = jax.random.uniform(kb, (out_features,), dtype, -bound, bound)
    return w, b


def prepare_params(wq, bq, wk, bk, wv, bv, compute_dtype=jnp.float32):
    """One-time (outside jit) weight re-layout:
       * transpose to (in, out) so the kernel does plain x @ W on the MXU,
       * fuse K and V weights/biases into a single (Dc, 2Q) / (1, 2Q) block,
       * optionally down-cast the weights to bf16 for MXU throughput
         (biases stay f32; accumulation is always f32)."""
    wq_t = jnp.asarray(wq.T, compute_dtype)                               # (Dx, Q)
    wkv_t = jnp.concatenate([wk.T, wv.T], axis=1).astype(compute_dtype)   # (Dc, 2Q)
    bq_r = jnp.asarray(bq, jnp.float32).reshape(1, -1)                    # (1, Q)
    bkv_r = jnp.concatenate([bk, bv]).astype(jnp.float32).reshape(1, -1)  # (1, 2Q)
    return wq_t, bq_r, wkv_t, bkv_r


def _pick_batch_tile(batch, max_tile=8):
    """Largest divisor of `batch` that still leaves >= 2 grid steps (v7x TC
    split), capped by max_tile; falls back to 1."""
    target = min(max_tile, max(1, batch // 2))
    for t in range(target, 0, -1):
        if batch % t == 0:
            return t
    return 1


@jax.jit
def attention_head_forward(X, C, wq_t, bq_r, wkv_t, bkv_r):
    B, N, Dx = X.shape
    _, M, Dc = C.shape
    Q = wq_t.shape[1]
    scale = 1.0 / (Q ** 0.5)              # matches q.size(-1) ** 0.5 divisor
    b_tile = _pick_batch_tile(B)

    kernel = functools.partial(attention_head_kernel, scale=scale)

    def resident(shape):
        # Constant index_map -> block fetched once, stays resident in VMEM.
        return pl.BlockSpec(shape, lambda b: (0,) * len(shape))

    return pl.pallas_call(
        kernel,
        out_shape=jax.ShapeDtypeStruct((B, N, Q), X.dtype),
        grid=(B // b_tile,),
        in_specs=[
            pl.BlockSpec((b_tile, N, Dx), lambda b: (b, 0, 0)),   # X tile
            pl.BlockSpec((b_tile, M, Dc), lambda b: (b, 0, 0)),   # C tile
            resident((Dx, Q)), resident((1, Q)),                  # Wq^T, bq
            resident((Dc, 2 * Q)), resident((1, 2 * Q)),          # [Wk^T|Wv^T], [bk|bv]
        ],
        out_specs=pl.BlockSpec((b_tile, N, Q), lambda b: (b, 0, 0)),
        compiler_params=pltpu.CompilerParams(
            dimension_semantics=("parallel",),       # megacore split on v7x
            vmem_limit_bytes=32 * 1024 * 1024),
    )(X, C, wq_t, bq_r, wkv_t, bkv_r)
    # TODO(synk): for production N/M, add an "arbitrary" M-axis grid dim that
    # streams k/v tiles (softmax is over N, so no online-softmax rework needed).


def reference_forward(X, C, wq, bq, wk, bk, wv, bv):
    q = X @ wq.T + bq
    k = C @ wk.T + bk
    v = C @ wv.T + bv
    a = jnp.einsum("bnq,bmq->bnm", q, k) / (q.shape[-1] ** 0.5)
    a = jax.nn.softmax(a, axis=1)          # torch.softmax(..., dim=1)
    return jnp.einsum("bnm,bmq->bnq", a, v)


if __name__ == "__main__":
    # Small shapes consistent with the module; query_size chosen lane-dense (128).
    batch, n_x, n_c = 4, 16, 8
    counts_size, covariates_size, query_size = 24, 20, 128

    key = jax.random.PRNGKey(0)
    kx, kc, kq, kk, kv = jax.random.split(key, 5)

    X = jax.random.normal(kx, (batch, n_x, counts_size), jnp.float32)
    C = jax.random.normal(kc, (batch, n_c, covariates_size), jnp.float32)

    wq, bq = init_linear(kq, counts_size, query_size)
    wk, bk = init_linear(kk, covariates_size, query_size)
    wv, bv = init_linear(kv, covariates_size, query_size)

    # Weight re-layout happens once, outside the jitted forward.
    # (Use compute_dtype=jnp.bfloat16 here for ~2-3x MXU throughput at larger
    #  shapes; kept f32 for exact parity in this demo.)
    params = prepare_params(wq, bq, wk, bk, wv, bv, compute_dtype=jnp.float32)

    out = attention_head_forward(X, C, *params)
    out = jax.block_until_ready(out)

    ref = reference_forward(X, C, wq, bq, wk, bk, wv, bv)
    assert out.shape == (batch, n_x, query_size)
    # Tolerance covers the EUP approximate reciprocal in the softmax divide
    # plus MXU f32 pass-count differences vs. the XLA reference.
    assert jnp.allclose(out, ref, atol=5e-3, rtol=5e-3)

    print("KERNEL_OK")
</pallas_src>

<mosaic_0001>
module attributes {stable_mosaic.version = 11 : i64} {
  func.func @attention_head_kernel(%arg0: i32, %arg1: memref<2x16x24xf32, #tpu.memory_space<vmem>>, %arg2: memref<2x8x20xf32, #tpu.memory_space<vmem>>, %arg3: memref<24x128xf32, #tpu.memory_space<vmem>>, %arg4: memref<1x128xf32, #tpu.memory_space<vmem>>, %arg5: memref<20x256xf32, #tpu.memory_space<vmem>>, %arg6: memref<1x256xf32, #tpu.memory_space<vmem>>, %arg7: memref<2x16x128xf32, #tpu.memory_space<vmem>>) attributes {dimension_semantics = [#tpu.dimension_semantics<parallel>], iteration_bounds = array<i64: 2>, scalar_prefetch = 0 : i64, scratch_operands = 0 : i64, tpu.core_type = #tpu.core_type<tc>, window_params = [{transform_indices = @transform_0, window_bounds = array<i64: 2, 16, 24>}, {transform_indices = @transform_1, window_bounds = array<i64: 2, 8, 20>}, {pipeline_mode = #tpu.pipeline_mode<synchronous>, transform_indices = @transform_2, window_bounds = array<i64: 24, 128>}, {pipeline_mode = #tpu.pipeline_mode<synchronous>, transform_indices = @transform_3, window_bounds = array<i64: 1, 128>}, {pipeline_mode = #tpu.pipeline_mode<synchronous>, transform_indices = @transform_4, window_bounds = array<i64: 20, 256>}, {pipeline_mode = #tpu.pipeline_mode<synchronous>, transform_indices = @transform_5, window_bounds = array<i64: 1, 256>}, {transform_indices = @transform_6, window_bounds = array<i64: 2, 16, 128>}]} {
    %c0 = arith.constant 0 : index
    %c0_0 = arith.constant 0 : index
    %c0_1 = arith.constant 0 : index
    %0 = vector.load %arg1[%c0, %c0_0, %c0_1] : memref<2x16x24xf32, #tpu.memory_space<vmem>>, vector<2x16x24xf32>
    %1 = vector.shape_cast %0 : vector<2x16x24xf32> to vector<32x24xf32>
    %c0_2 = arith.constant 0 : index
    %c0_3 = arith.constant 0 : index
    %c0_4 = arith.constant 0 : index
    %2 = vector.load %arg2[%c0_2, %c0_3, %c0_4] : memref<2x8x20xf32, #tpu.memory_space<vmem>>, vector<2x8x20xf32>
    %3 = vector.shape_cast %2 : vector<2x8x20xf32> to vector<16x20xf32>
    %c0_5 = arith.constant 0 : index
    %c0_6 = arith.constant 0 : index
    %4 = vector.load %arg3[%c0_5, %c0_6] : memref<24x128xf32, #tpu.memory_space<vmem>>, vector<24x128xf32>
    %cst = arith.constant dense<0.000000e+00> : vector<32x128xf32>
    %5 = tpu.matmul %1, %4, %cst {dimension_numbers = #tpu.dot_dimension_numbers<[1], [0], [0], [1], [0, 0, 1, 1], [], []>} : vector<32x24xf32>, vector<24x128xf32>, vector<32x128xf32> -> vector<32x128xf32>
    %c0_7 = arith.constant 0 : index
    %c0_8 = arith.constant 0 : index
    %6 = vector.load %arg4[%c0_7, %c0_8] : memref<1x128xf32, #tpu.memory_space<vmem>>, vector<1x128xf32>
    %7 = vector.broadcast %6 : vector<1x128xf32> to vector<32x128xf32>
    %8 = arith.addf %5, %7 : vector<32x128xf32>
    %9 = vector.shape_cast %8 : vector<32x128xf32> to vector<2x16x128xf32>
    %c0_9 = arith.constant 0 : index
    %c0_10 = arith.constant 0 : index
    %10 = vector.load %arg5[%c0_9, %c0_10] : memref<20x256xf32, #tpu.memory_space<vmem>>, vector<20x256xf32>
    %cst_11 = arith.constant dense<0.000000e+00> : vector<16x256xf32>
    %11 = tpu.matmul %3, %10, %cst_11 {dimension_numbers = #tpu.dot_dimension_numbers<[1], [0], [0], [1], [0, 0, 1, 1], [], []>} : vector<16x20xf32>, vector<20x256xf32>, vector<16x256xf32> -> vector<16x256xf32>
    %c0_12 = arith.constant 0 : index
    %c0_13 = arith.constant 0 : index
    %12 = vector.load %arg6[%c0_12, %c0_13] : memref<1x256xf32, #tpu.memory_space<vmem>>, vector<1x256xf32>
    %13 = vector.broadcast %12 : vector<1x256xf32> to vector<16x256xf32>
    %14 = arith.addf %11, %13 : vector<16x256xf32>
    %15 = vector.shape_cast %14 : vector<16x256xf32> to vector<2x8x256xf32>
    %16 = vector.extract_strided_slice %15 {offsets = [0, 0, 0], sizes = [2, 8, 128], strides = [1, 1, 1]} : vector<2x8x256xf32> to vector<2x8x128xf32>
    %17 = vector.extract_strided_slice %15 {offsets = [0, 0, 128], sizes = [2, 8, 128], strides = [1, 1, 1]} : vector<2x8x256xf32> to vector<2x8x128xf32>
    %cst_14 = arith.constant dense<0.000000e+00> : vector<2x16x8xf32>
    %18 = tpu.matmul %9, %16, %cst_14 {dimension_numbers = #tpu.dot_dimension_numbers<[2], [2], [1], [1], [0, 0, 0, 1, 1, 1], [0], [0]>} : vector<2x16x128xf32>, vector<2x8x128xf32>, vector<2x16x8xf32> -> vector<2x16x8xf32>
    %cst_15 = arith.constant 0.0883883461 : f32
    %19 = vector.broadcast %cst_15 : f32 to vector<2x16x8xf32>
    %20 = arith.mulf %18, %19 : vector<2x16x8xf32>
    %cst_16 = arith.constant dense<0xFF800000> : vector<2x8xf32>
    %21 = vector.multi_reduction <maximumf>, %20, %cst_16 [1] : vector<2x16x8xf32> to vector<2x8xf32>
    %22 = vector.shape_cast %21 : vector<2x8xf32> to vector<2x1x8xf32>
    %23 = vector.broadcast %22 : vector<2x1x8xf32> to vector<2x16x8xf32>
    %24 = arith.subf %20, %23 : vector<2x16x8xf32>
    %25 = math.exp %24 : vector<2x16x8xf32>
    %cst_17 = arith.constant dense<0.000000e+00> : vector<2x8xf32>
    %26 = vector.multi_reduction <add>, %25, %cst_17 [1] : vector<2x16x8xf32> to vector<2x8xf32>
    %27 = vector.shape_cast %26 : vector<2x8xf32> to vector<2x1x8xf32>
    %28 = tpu.reciprocal %27 {approx = true} : vector<2x1x8xf32> -> vector<2x1x8xf32>
    %29 = vector.broadcast %28 : vector<2x1x8xf32> to vector<2x16x8xf32>
    %30 = arith.mulf %25, %29 : vector<2x16x8xf32>
    %cst_18 = arith.constant dense<0.000000e+00> : vector<2x16x128xf32>
    %31 = tpu.matmul %30, %17, %cst_18 {dimension_numbers = #tpu.dot_dimension_numbers<[2], [1], [1], [2], [0, 0, 0, 1, 1, 2], [0], [0]>} : vector<2x16x8xf32>, vector<2x8x128xf32>, vector<2x16x128xf32> -> vector<2x16x128xf32>
    %c0_19 = arith.constant 0 : index
    %c0_20 = arith.constant 0 : index
    %c0_21 = arith.constant 0 : index
    %32 = vector.load %arg7[%c0_19, %c0_20, %c0_21] : memref<2x16x128xf32, #tpu.memory_space<vmem>>, vector<2x16x128xf32>
    tpu.vector_store %arg7[%c0_19, %c0_20, %c0_21], %31 {strides = array<i32>} : memref<2x16x128xf32, #tpu.memory_space<vmem>>, vector<2x16x128xf32>,
    return
  }
  func.func @transform_0(%arg0: i32) -> (i32, i32, i32) {
    %c0_i32 = arith.constant 0 : i32
    %c0_i32_0 = arith.constant 0 : i32
    %c0_i32_1 = arith.constant 0 : i32
    return %arg0, %c0_i32, %c0_i32_0 : i32, i32, i32
  }
  func.func @transform_1(%arg0: i32) -> (i32, i32, i32) {
    %c0_i32 = arith.constant 0 : i32
    %c0_i32_0 = arith.constant 0 : i32
    %c0_i32_1 = arith.constant 0 : i32
    return %arg0, %c0_i32, %c0_i32_0 : i32, i32, i32
  }
  func.func @transform_2(%arg0: i32) -> (i32, i32) {
    %c0_i32 = arith.constant 0 : i32
    %c0_i32_0 = arith.constant 0 : i32
    %c0_i32_1 = arith.constant 0 : i32
    return %c0_i32, %c0_i32_0 : i32, i32
  }
  func.func @transform_3(%arg0: i32) -> (i32, i32) {
    %c0_i32 = arith.constant 0 : i32
    %c0_i32_0 = arith.constant 0 : i32
    %c0_i32_1 = arith.constant 0 : i32
    return %c0_i32, %c0_i32_0 : i32, i32
  }
  func.func @transform_4(%arg0: i32) -> (i32, i32) {
    %c0_i32 = arith.constant 0 : i32
    %c0_i32_0 = arith.constant 0 : i32
    %c0_i32_1 = arith.constant 0 : i32
    return %c0_i32, %c0_i32_0 : i32, i32
  }
  func.func @transform_5(%arg0: i32) -> (i32, i32) {
    %c0_i32 = arith.constant 0 : i32
    %c0_i32_0 = arith.constant 0 : i32
    %c0_i32_1 = arith.constant 0 : i32
    return %c0_i32, %c0_i32_0 : i32, i32
  }
  func.func @transform_6(%arg0: i32) -> (i32, i32, i32) {
    %c0_i32 = arith.constant 0 : i32
    %c0_i32_0 = arith.constant 0 : i32
    %c0_i32_1 = arith.constant 0 : i32
    return %arg0, %c0_i32, %c0_i32_0 : i32, i32, i32
  }
}

</mosaic_0001>

<llo_original>
// kernel: attention_head_forward.1
$region0: #{attention_head_forward.1}
  #allocation0 [shape = 'u32[]', space=smem, size = 0x4, offset = 0x4, fixed_abs, tag = 'smem constant byte address 0x4 - core index']
  #allocation1 [shape = 'u32[144,128]{1,0:T(1,128)}', space=vmem, size = 0x12000, scoped, tag = 'internal scratch']
  %s0 = inlined_call_operand.hbm [shape: f32[4,16,24], index: 0, kind: input, shape index: {}]
  %s1 = inlined_call_operand.hbm [shape: f32[4,8,20], index: 1, kind: input, shape index: {}]
  %s2 = inlined_call_operand.hbm [shape: f32[24,128], index: 2, kind: input, shape index: {}]
  %s3 = inlined_call_operand.vmem [shape: f32[1,128], index: 3, kind: input, shape index: {}]
  %s4 = inlined_call_operand.hbm [shape: f32[20,256], index: 4, kind: input, shape index: {}]
  %s5 = inlined_call_operand.vmem [shape: f32[1,256], index: 5, kind: input, shape index: {}]
  %s6 = inlined_call_operand.hbm [shape: f32[4,16,128], index: 6, kind: output, shape index: {}]
  %s7 = sld [smem:[#allocation0]]
  $region73: #{attention_head_forward.1} parent=0
    _
  %s9 = ssub.s32 1, %s7
  %s10 = scalar_select 0, %s9, %s7
  $region1: #{attention_head_forward.1} parent=0
    #allocation2 [shape = 'u8[32768]{0}', space=vmem, size = 0x8000, scoped, tag = 'input window, operand 0']
    #allocation3 [shape = 's32[2]{0}', space=sflag, size = 0x8, scoped, tag = 'scoped memory for attention_head_forward.1']
    #allocation4 [shape = 's32[2]{0}', space=sflag, size = 0x8, scoped, tag = 'scoped memory for attention_head_forward.1']
    #allocation5 [shape = 'u8[16384]{0}', space=vmem, size = 0x4000, scoped, tag = 'input window, operand 1']
    #allocation6 [shape = 's32[2]{0}', space=sflag, size = 0x8, scoped, tag = 'scoped memory for attention_head_forward.1']
    #allocation7 [shape = 'u8[12288]{0}', space=vmem, size = 0x3000, scoped, tag = 'input window, operand 2, single buffered']
    #allocation8 [shape = 'u8[24576]{0}', space=vmem, size = 0x6000, scoped, tag = 'input window, operand 4, single buffered']
    #allocation9 [shape = 's32[1]{0}', space=sflag, size = 0x4, scoped, tag = 'scoped memory for attention_head_forward.1']
    #allocation10 [shape = 'u8[32768]{0}', space=vmem, size = 0x8000, scoped, tag = 'output window, operand 0']
    %11 = vsyncpa [#allocation3], 0
    %s12 = scalar_lea.sflag [#allocation3], 1
    %13 = vsyncpa %s12, 0
    %14 = vsyncpa [#allocation6], 0
    %s15 = scalar_lea.sflag [#allocation6], 1
    %16 = vsyncpa %s15, 0
    %17 = vsyncpa [#allocation9], 0
    %18 = vsyncpa [#allocation4], 0
    %s19 = scalar_lea.sflag [#allocation4], 1
    %20 = vsyncpa %s19, 0
    loop: start=0, step=1, limit=4
    $region2: #{attention_head_forward.1} parent=1 // loop_pre_header
      _
    $region3: #{attention_head_forward.1} parent=1 // loop_header
      %s22 = sphi 0, %s26
      %p23 = scmp.ge.s32.totalorder %s22, 4
      %s32 = sphi 0, %s34
      %s35 = sphi 0, %s32
      %s36 = sphi 0, %s35
      %s52 = sphi 0, %s36
      %s58 = sphi 0, %s60
      %s61 = sphi 0, %s58
      %s62 = sphi 0, %s61
      %s78 = sphi 0, %s62
      %s82 = sphi 0, %s82
      %s84 = sphi 0, %s82
      %s85 = sphi 0, %s84
      %s99 = sphi 0, %s85
      %s103 = sphi 0, %s103
      %s105 = sphi 0, %s103
      %s106 = sphi 0, %s105
      %s120 = sphi 0, %s106
      %s124 = sphi 0, %s124
      %s126 = sphi 0, %s124
      %s127 = sphi 0, %s126
      %s141 = sphi 0, %s127
      %s145 = sphi 0, %s145
      %s147 = sphi 0, %s145
      %s148 = sphi 0, %s147
      %s162 = sphi 0, %s148
      %s168 = sphi 0, %s170
      %s171 = sphi 0, %s168
      %s172 = sphi 0, %s171
      %s188 = sphi 0, %s172
    $region4: #{attention_head_forward.1} parent=1 // loop_header_branch
      %25 = sbr.rel (%p23) target = $region8
    $region5: #{attention_head_forward.1} parent=1 // loop_body
      %s27 = ssub.s32 %s22, 1
      %s28 = ssub.s32 %s22, 2
      %s29 = sadd.s32 %s22, 1
      %s30 = ssub.s32 %s22, %s29
      %p31 = scmp.eq.s32.totalorder %s30, 0
      %s33 = sadd.s32 %s32, 1
      %s34 = scalar_select %p31, %s32, %s33
      %p37 = pneg %p31
      %p38 = scmp.eq.s32.totalorder %s22, 1
      %p39 = por %p37, %p38
      %p40 = scmp.ne.s32.totalorder %s32, %s35
      %p41 = scmp.eq.s32.totalorder %s22, 0
      %p42 = por %p40, %p41
      %p43 = scmp.ne.s32.totalorder %s32, %s35
      %p44 = scmp.eq.s32.totalorder %s27, 1
      %p45 = por %p43, %p44
      %p46 = scmp.ne.s32.totalorder %s35, %s36
      %p47 = scmp.eq.s32.totalorder %s27, 0
      %p48 = por %p46, %p47
      %p49 = scmp.ne.s32.totalorder %s35, %s36
      %p50 = scmp.eq.s32.totalorder %s28, 1
      %p51 = por %p49, %p50
      %p53 = scmp.ne.s32.totalorder %s36, %s52
      %p54 = scmp.eq.s32.totalorder %s28, 0
      %p55 = por %p53, %p54
      %s56 = ssub.s32 %s22, %s29
      %p57 = scmp.eq.s32.totalorder %s56, 0
      %s59 = sadd.s32 %s58, 1
      %s60 = scalar_select %p57, %s58, %s59
      %p63 = pneg %p57
      %p64 = scmp.eq.s32.totalorder %s22, 1
      %p65 = por %p63, %p64
      %p66 = scmp.ne.s32.totalorder %s58, %s61
      %p67 = scmp.eq.s32.totalorder %s22, 0
      %p68 = por %p66, %p67
      %p69 = scmp.ne.s32.totalorder %s58, %s61
      %p70 = scmp.eq.s32.totalorder %s27, 1
      %p71 = por %p69, %p70
      %p72 = scmp.ne.s32.totalorder %s61, %s62
      %p73 = scmp.eq.s32.totalorder %s27, 0
      %p74 = por %p72, %p73
      %p75 = scmp.ne.s32.totalorder %s61, %s62
      %p76 = scmp.eq.s32.totalorder %s28, 1
      %p77 = por %p75, %p76
      %p79 = scmp.ne.s32.totalorder %s62, %s78
      %p80 = scmp.eq.s32.totalorder %s28, 0
      %p81 = por %p79, %p80
      %s83 = sadd.s32 %s82, 1
      %p86 = scmp.eq.s32.totalorder %s22, 1
      %p87 = scmp.ne.s32.totalorder %s82, %s84
      %p88 = scmp.eq.s32.totalorder %s22, 0
      %p89 = por %p87, %p88
      %p90 = scmp.ne.s32.totalorder %s82, %s84
      %p91 = scmp.eq.s32.totalorder %s27, 1
      %p92 = por %p90, %p91
      %p93 = scmp.ne.s32.totalorder %s84, %s85
      %p94 = scmp.eq.s32.totalorder %s27, 0
      %p95 = por %p93, %p94
      %p96 = scmp.ne.s32.totalorder %s84, %s85
      %p97 = scmp.eq.s32.totalorder %s28, 1
      %p98 = por %p96, %p97
      %p100 = scmp.ne.s32.totalorder %s85, %s99
      %p101 = scmp.eq.s32.totalorder %s28, 0
      %p102 = por %p100, %p101
      %s104 = sadd.s32 %s103, 1
      %p107 = scmp.eq.s32.totalorder %s22, 1
      %p108 = scmp.ne.s32.totalorder %s103, %s105
      %p109 = scmp.eq.s32.totalorder %s22, 0
      %p110 = por %p108, %p109
      %p111 = scmp.ne.s32.totalorder %s103, %s105
      %p112 = scmp.eq.s32.totalorder %s27, 1
      %p113 = por %p111, %p112
      %p114 = scmp.ne.s32.totalorder %s105, %s106
      %p115 = scmp.eq.s32.totalorder %s27, 0
      %p116 = por %p114, %p115
      %p117 = scmp.ne.s32.totalorder %s105, %s106
      %p118 = scmp.eq.s32.totalorder %s28, 1
      %p119 = por %p117, %p118
      %p121 = scmp.ne.s32.totalorder %s106, %s120
      %p122 = scmp.eq.s32.totalorder %s28, 0
      %p123 = por %p121, %p122
      %s125 = sadd.s32 %s124, 1
      %p128 = scmp.eq.s32.totalorder %s22, 1
      %p129 = scmp.ne.s32.totalorder %s124, %s126
      %p130 = scmp.eq.s32.totalorder %s22, 0
      %p131 = por %p129, %p130
      %p132 = scmp.ne.s32.totalorder %s124, %s126
      %p133 = scmp.eq.s32.totalorder %s27, 1
      %p134 = por %p132, %p133
      %p135 = scmp.ne.s32.totalorder %s126, %s127
      %p136 = scmp.eq.s32.totalorder %s27, 0
      %p137 = por %p135, %p136
      %p138 = scmp.ne.s32.totalorder %s126, %s127
      %p139 = scmp.eq.s32.totalorder %s28, 1
      %p140 = por %p138, %p139
      %p142 = scmp.ne.s32.totalorder %s127, %s141
      %p143 = scmp.eq.s32.totalorder %s28, 0
      %p144 = por %p142, %p143
      %s146 = sadd.s32 %s145, 1
      %p149 = scmp.eq.s32.totalorder %s22, 1
      %p150 = scmp.ne.s32.totalorder %s145, %s147
      %p151 = scmp.eq.s32.totalorder %s22, 0
      %p152 = por %p150, %p151
      %p153 = scmp.ne.s32.totalorder %s145, %s147
      %p154 = scmp.eq.s32.totalorder %s27, 1
      %p155 = por %p153, %p154
      %p156 = scmp.ne.s32.totalorder %s147, %s148
      %p157 = scmp.eq.s32.totalorder %s27, 0
      %p158 = por %p156, %p157
      %p159 = scmp.ne.s32.totalorder %s147, %s148
      %p160 = scmp.eq.s32.totalorder %s28, 1
      %p161 = por %p159, %p160
      %p163 = scmp.ne.s32.totalorder %s148, %s162
      %p164 = scmp.eq.s32.totalorder %s28, 0
      %p165 = por %p163, %p164
      %s166 = ssub.s32 %s22, %s29
      %p167 = scmp.eq.s32.totalorder %s166, 0
      %s169 = sadd.s32 %s168, 1
      %s170 = scalar_select %p167, %s168, %s169
      %p173 = pneg %p167
      %p174 = scmp.eq.s32.totalorder %s22, 1
      %p175 = por %p173, %p174
      %p176 = scmp.ne.s32.totalorder %s168, %s171
      %p177 = scmp.eq.s32.totalorder %s22, 0
      %p178 = por %p176, %p177
      %p179 = scmp.ne.s32.totalorder %s168, %s171
      %p180 = scmp.eq.s32.totalorder %s27, 1
      %p181 = por %p179, %p180
      %p182 = scmp.ne.s32.totalorder %s171, %s172
      %p183 = scmp.eq.s32.totalorder %s27, 0
      %p184 = por %p182, %p183
      %p185 = scmp.ne.s32.totalorder %s171, %s172
      %p186 = scmp.eq.s32.totalorder %s28, 1
      %p187 = por %p185, %p186
      %p189 = scmp.ne.s32.totalorder %s172, %s188
      %p190 = scmp.eq.s32.totalorder %s28, 0
      %p191 = por %p189, %p190
      %p192 = scmp.le.s32.totalorder 1, %s22
      %p193 = scmp.lt.s32.totalorder %s22, 3
      %p194 = pnand %p192, %p193
      %p195 = pneg %p194
      // Predicated region
      $region9: #{attention_head_forward.1} parent=5 // pred_check
        _
      $region10: #{attention_head_forward.1} parent=5 // pred_check_branch
        %197 = sbr.rel (%p194) target = $region12
      $region11: #{attention_head_forward.1} parent=5 // pred_region
        %s198 = ssub.s32 %s22, 1
        // Predicated region
        $region13: #{attention_head_forward.1} parent=11 // pred_check
          %p199 = pneg %p95
        $region14: #{attention_head_forward.1} parent=11 // pred_check_branch
          %201 = sbr.rel (%p199) target = $region16
        $region15: #{attention_head_forward.1} parent=11 // pred_region
          %s203 = ssub.s32 384, 384
          %204 = vsyncadd [#allocation6], %s203
          %s205 = sshll.u32 [#allocation7], 4
          %s206 = int_to_ptr.vmem [resolvable:$true] %s205
          %211 = dma.hbm_to_vmem [thread:$0]  %s2, 384, %s206, [#allocation6], 128, 128, 8
        $region16: #{attention_head_forward.1} parent=11 // pred_fallthru
          _
        // Predicated region
        $region17: #{attention_head_forward.1} parent=11 // pred_check
          %p212 = pneg %p116
        $region18: #{attention_head_forward.1} parent=11 // pred_check_branch
          %214 = sbr.rel (%p212) target = $region20
        $region19: #{attention_head_forward.1} parent=11 // pred_region
          _
        $region20: #{attention_head_forward.1} parent=11 // pred_fallthru
          _
        // Predicated region
        $region21: #{attention_head_forward.1} parent=11 // pred_check
          %p215 = pneg %p137
        $region22: #{attention_head_forward.1} parent=11 // pred_check_branch
          %217 = sbr.rel (%p215) target = $region24
        $region23: #{attention_head_forward.1} parent=11 // pred_region
          %s219 = ssub.s32 768, 768
          %220 = vsyncadd [#allocation9], %s219
          %s221 = sshll.u32 [#allocation8], 4
          %s222 = int_to_ptr.vmem [resolvable:$true] %s221
          %227 = dma.hbm_to_vmem [thread:$0]  %s4, 768, %s222, [#allocation9], 256, 256, 16
        $region24: #{attention_head_forward.1} parent=11 // pred_fallthru
          _
        // Predicated region
        $region25: #{attention_head_forward.1} parent=11 // pred_check
          %p228 = pneg %p158
        $region26: #{attention_head_forward.1} parent=11 // pred_check_branch
          %230 = sbr.rel (%p228) target = $region28
        $region27: #{attention_head_forward.1} parent=11 // pred_region
          _
        $region28: #{attention_head_forward.1} parent=11 // pred_fallthru
          _
      $region12: #{attention_head_forward.1} parent=5 // pred_fallthru
        _
      %p231 = scmp.lt.s32.totalorder %s22, 2
      // Predicated region
      $region29: #{attention_head_forward.1} parent=5 // pred_check
        %p232 = pneg %p231
      $region30: #{attention_head_forward.1} parent=5 // pred_check_branch
        %234 = sbr.rel (%p232) target = $region32
      $region31: #{attention_head_forward.1} parent=5 // pred_region
        // Predicated region
        $region33: #{attention_head_forward.1} parent=31 // pred_check
          %p235 = pneg %p42
        $region34: #{attention_head_forward.1} parent=31 // pred_check_branch
          %237 = sbr.rel (%p235) target = $region36
        $region35: #{attention_head_forward.1} parent=31 // pred_region
          %s238 = sand.u32 %s32, 1
          %s239 = scalar_lea.sflag [#allocation3], %s238
          %s240 = sand.u32 %s32, 1
          %s241 = smul.addr %s240, 32
          %s242 = scalar_lea.vmem [#allocation2], %s241
          %s243 = smul.u32 2, %s22
          %s245 = ssub.s32 512, 512
          %246 = vsyncadd %s239, %s245
          %s247 = smul.addr %s243, 2
          %s248 = smul.addr %s247, 128
          %s249 = scalar_lea.hbm %s0, %s248
          %s250 = sshll.u32 %s242, 4
          %s251 = int_to_ptr.vmem [resolvable:$true] %s250
          %256 = dma.hbm_to_vmem [thread:$0]  %s249, 512, %s251, %s239, 128, 128, 8
        $region36: #{attention_head_forward.1} parent=31 // pred_fallthru
          _
        // Predicated region
        $region37: #{attention_head_forward.1} parent=31 // pred_check
          %p257 = pneg %p68
        $region38: #{attention_head_forward.1} parent=31 // pred_check_branch
          %259 = sbr.rel (%p257) target = $region40
        $region39: #{attention_head_forward.1} parent=31 // pred_region
          %s260 = sand.u32 %s22, 1
          %s261 = scalar_lea.sflag [#allocation6], %s260
          %s262 = sand.u32 %s58, 1
          %s263 = smul.addr %s262, 16
          %s264 = scalar_lea.vmem [#allocation5], %s263
          %s265 = smul.u32 2, %s22
          %s267 = ssub.s32 256, 256
          %268 = vsyncadd %s261, %s267
          %s269 = smul.addr %s265, 128
          %s270 = scalar_lea.hbm %s1, %s269
          %s271 = sshll.u32 %s264, 4
          %s272 = int_to_ptr.vmem [resolvable:$true] %s271
          %277 = dma.hbm_to_vmem [thread:$0]  %s270, 256, %s272, %s261, 128, 128, 8
        $region40: #{attention_head_forward.1} parent=31 // pred_fallthru
          _
      $region32: #{attention_head_forward.1} parent=5 // pred_fallthru
        _
      %p278 = scmp.le.s32.totalorder 1, %s22
      %p279 = scmp.lt.s32.totalorder %s22, 3
      %p280 = pnand %p278, %p279
      %p281 = pneg %p280
      // Predicated region
      $region41: #{attention_head_forward.1} parent=5 // pred_check
        _
      $region42: #{attention_head_forward.1} parent=5 // pred_check_branch
        %283 = sbr.rel (%p280) target = $region44
      $region43: #{attention_head_forward.1} parent=5 // pred_region
        %s284 = ssub.s32 %s22, 1
        %s285 = sand.u32 %s35, 1
        %s286 = scalar_lea.sflag [#allocation3], %s285
        %s287 = sand.u32 %s35, 1
        %s288 = smul.addr %s287, 32
        %s289 = scalar_lea.vmem [#allocation2], %s288
        // Predicated region
        $region45: #{attention_head_forward.1} parent=43 // pred_check
          %p290 = pneg %p48
        $region46: #{attention_head_forward.1} parent=43 // pred_check_branch
          %292 = sbr.rel (%p290) target = $region48
        $region47: #{attention_head_forward.1} parent=43 // pred_region
          %293 = dma.done %s286, 512
        $region48: #{attention_head_forward.1} parent=43 // pred_fallthru
          _
        %s294 = sand.u32 %s27, 1
        %s295 = scalar_lea.sflag [#allocation6], %s294
        %s296 = sand.u32 %s61, 1
        %s297 = smul.addr %s296, 16
        %s298 = scalar_lea.vmem [#allocation5], %s297
        // Predicated region
        $region49: #{attention_head_forward.1} parent=43 // pred_check
          %p299 = pneg %p74
        $region50: #{attention_head_forward.1} parent=43 // pred_check_branch
          %301 = sbr.rel (%p299) target = $region52
        $region51: #{attention_head_forward.1} parent=43 // pred_region
          %302 = dma.done %s295, 256
        $region52: #{attention_head_forward.1} parent=43 // pred_fallthru
          _
        // Predicated region
        $region53: #{attention_head_forward.1} parent=43 // pred_check
          %p303 = pneg %p95
        $region54: #{attention_head_forward.1} parent=43 // pred_check_branch
          %305 = sbr.rel (%p303) target = $region56
        $region55: #{attention_head_forward.1} parent=43 // pred_region
          %306 = dma.done [#allocation6], 384
        $region56: #{attention_head_forward.1} parent=43 // pred_fallthru
          _
        // Predicated region
        $region57: #{attention_head_forward.1} parent=43 // pred_check
          %p307 = pneg %p137
        $region58: #{attention_head_forward.1} parent=43 // pred_check_branch
          %309 = sbr.rel (%p307) target = $region60
        $region59: #{attention_head_forward.1} parent=43 // pred_region
          %310 = dma.done [#allocation9], 768
        $region60: #{attention_head_forward.1} parent=43 // pred_fallthru
          _
        %s311 = sand.u32 %s35, 1
        %s312 = scalar_lea.sflag [#allocation3], %s311
        %s313 = sand.u32 %s35, 1
        %s314 = smul.addr %s313, 32
        %s315 = scalar_lea.vmem [#allocation2], %s314
        %p316 = pneg %p48
        %p317 = pneg %p45
        %s318 = sand.u32 %s27, 1
        %s319 = scalar_lea.sflag [#allocation6], %s318
        %s320 = sand.u32 %s61, 1
        %s321 = smul.addr %s320, 16
        %s322 = scalar_lea.vmem [#allocation5], %s321
        %p323 = pneg %p74
        %p324 = pneg %p71
        %p325 = pneg %p95
        %p326 = pneg %p92
        %p327 = pneg %p116
        %p328 = pneg %p113
        %p329 = pneg %p137
        %p330 = pneg %p134
        %p331 = pneg %p158
        %p332 = pneg %p155
        %p333 = pneg %p184
        %p334 = pneg %p181
        %s335 = sand.u32 %s171, 1
        %s336 = scalar_lea.sflag [#allocation4], %s335
        %s337 = sand.u32 %s171, 1
        %s338 = smul.addr %s337, 32
        %s339 = scalar_lea.vmem [#allocation10], %s338
        %s340 = smul.u32 2, %s27
        %s341 = smul.u32 2, %s27
        %s342 = smul.u32 2, %s27
        %v343 = vld [vmem:[%s289] sm:$0xff]
        %v344 = vld [vmem:[%s289 + $0x8] sm:$0xff]
        %v345 = vld [vmem:[%s289 + $0x10] sm:$0xff]
        %v346 = vld [vmem:[%s289 + $0x18] sm:$0xff]
        %v347 = vld [vmem:[%s298] sm:$0xff]
        %v348 = vld [vmem:[%s298 + $0x8] sm:$0xff]
        %v349 = vld [vmem:[#allocation7] sm:$0xff]
        %v350 = vld [vmem:[#allocation7 + $0x8] sm:$0xff]
        %v351 = vld [vmem:[#allocation7 + $0x10] sm:$0xff]
        %v352 = vld [vmem:[%s3] sm:$0x1]
        %v354 = vlaneseq
        %v355 = vshrl.u32 %v354, 7
        %v356 = vsub.s32 0, %v355
        %v357 = vrot.slane %v352, %v356
        %vm359 = vcmask 195584
        %v361 = vsel %vm359, %v343, 0
        %v364 = vsel %vm359, %v344, 0
        %v367 = vsel %vm359, %v345, 0
        %v370 = vsel %vm359, %v346, 0
        %372 = vmatprep.subr.mxu0 0.0
        %373 = vmatpush1.msra.mxu0 %v349
        %374 = vmatprep.subr.mxu0 0.0
        %375 = vmatpush1.msra.mxu0 %v350
        %376 = vmatprep.subr.mxu0 0.0
        %377 = vmatpush1.msra.mxu0 %v351
        %378 = vmatprep.subr.mxu0 0.0
        %379 = vmatpush1.msra.mxu0 0.0
        %380 = vmatprep.subr.mxu0 0.0
        %381 = vmatpush1.msra.mxu0 0.0
        %382 = vmatprep.subr.mxu0 0.0
        %383 = vmatpush1.msra.mxu0 0.0
        %384 = vmatprep.subr.mxu0 0.0
        %385 = vmatpush1.msra.mxu0 0.0
        %386 = vmatprep.subr.mxu0 0.0
        %387 = vmatpush1.msra.mxu0 0.0
        %388 = vmatprep.subr.mxu0 0.0
        %389 = vmatpush1.msra.mxu0 0.0
        %390 = vmatprep.subr.mxu0 0.0
        %391 = vmatpush1.msra.mxu0 0.0
        %392 = vmatprep.subr.mxu0 0.0
        %393 = vmatpush1.msra.mxu0 0.0
        %394 = vmatprep.subr.mxu0 0.0
        %395 = vmatpush1.msra.mxu0 0.0
        %396 = vmatprep.subr.mxu0 0.0
        %397 = vmatpush1.msra.mxu0 0.0
        %398 = vmatprep.subr.mxu0 0.0
        %399 = vmatpush1.msra.mxu0 0.0
        %400 = vmatprep.subr.mxu0 0.0
        %401 = vmatpush1.msra.mxu0 0.0
        %402 = vmatprep.subr.mxu0 0.0
        %403 = vmatpush1.msra.mxu0 0.0
        %404 = vmatprep.subr.mxu0 0.0
        %405 = vmatpush1.msra.mxu0 0.0
        %406 = vmatprep.subr.mxu0 0.0
        %407 = vmatpush1.msra.mxu0 0.0
        %408 = vmatprep.subr.mxu0 0.0
        %409 = vmatpush1.msra.mxu0 0.0
        %410 = vmatprep.subr.mxu0 0.0
        %411 = vmatpush1.msra.mxu0 0.0
        %412 = vmatprep.subr.mxu0 0.0
        %413 = vmatpush1.msra.mxu0 0.0
        %414 = vmatprep.subr.mxu0 0.0
        %415 = vmatpush1.msra.mxu0 0.0
        %416 = vmatprep.subr.mxu0 0.0
        %417 = vmatpush1.msra.mxu0 0.0
        %418 = vmatprep.subr.mxu0 0.0
        %419 = vmatpush1.msra.mxu0 0.0
        %420 = vmatprep.subr.mxu0 0.0
        %421 = vmatpush1.msra.mxu0 0.0
        %422 = vmatprep.subr.mxu0 0.0
        %423 = vmatpush1.msra.mxu0 0.0
        %424 = vmatprep.subr.mxu0 0.0
        %425 = vmatpush1.msra.mxu0 0.0
        %426 = vmatprep.subr.mxu0 0.0
        %427 = vmatpush1.msra.mxu0 0.0
        %428 = vmatprep.subr.mxu0 0.0
        %429 = vmatpush1.msra.mxu0 0.0
        %430 = vmatprep.subr.mxu0 0.0
        %431 = vmatpush1.msra.mxu0 0.0
        %432 = vmatprep.subr.mxu0 0.0
        %433 = vmatpush1.msra.mxu0 0.0
        %434 = vmatprep.subr.mxu0 0.0
        %435 = vmatpush1.msra.mxu0 0.0
        %436 = vmatprep.mubr.f32.mxu0 0.0
        %437 = vmatmul.mubr.f32.gmra.mrb[0].mxu0 %v361
        %v438 = vpop.f32.mrb[0].mxu0
        %v439 = vadd.f32 %v357, %v438
        %v440 = vpop.f32.mrb[0].mxu0
        %441 = vmatprep.mubr.f32.mxu0 0.0
        %442 = vmatmul.mubr.f32.gmra.mrb[0].mxu0 %v364
        %v443 = vpop.f32.mrb[0].mxu0
        %v444 = vadd.f32 %v357, %v443
        %v445 = vpop.f32.mrb[0].mxu0
        %446 = vmatprep.mubr.f32.mxu0 0.0
        %447 = vmatmul.mubr.f32.gmra.mrb[0].mxu0 %v367
        %v448 = vpop.f32.mrb[0].mxu0
        %v449 = vadd.f32 %v357, %v448
        %v450 = vpop.f32.mrb[0].mxu0
        %451 = vmatprep.mubr.f32.mxu0 0.0
        %452 = vmatmul.mubr.f32.gmra.mrb[0].mxu0 %v370
        %v453 = vpop.f32.mrb[0].mxu0
        %v454 = vadd.f32 %v357, %v453
        %v455 = vpop.f32.mrb[0].mxu0
        %456 = vdwg.mxu0
        %v457 = vld [vmem:[#allocation8] sm:$0xff]
        %v458 = vld [vmem:[#allocation8 + $0x8] sm:$0xff]
        %v459 = vld [vmem:[#allocation8 + $0x10] sm:$0xff]
        %v460 = vld [vmem:[#allocation8 + $0x18] sm:$0xff]
        %v461 = vld [vmem:[#allocation8 + $0x20] sm:$0xf]
        %v462 = vld [vmem:[#allocation8 + $0x28] sm:$0xf]
        %v463 = vld [vmem:[%s5] sm:$0x3]
        %v465 = vlaneseq
        %v466 = vshrl.u32 %v465, 7
        %v467 = vsub.s32 0, %v466
        %v468 = vrot.slane %v463, %v467
        %v469 = vlaneseq
        %v470 = vshrl.u32 %v469, 7
        %v471 = vsub.s32 1, %v470
        %v472 = vrot.slane %v463, %v471
        %vm475 = vcmask 162816
        %v477 = vsel %vm475, %v347, 0
        %v480 = vsel %vm475, %v348, 0
        %vm482 = vcmask 1043456
        %v484 = vsel %vm482, %v461, 0
        %v487 = vsel %vm482, %v462, 0
        %489 = vmatprep.subr.mxu0 %v458
        %490 = vmatpush1.msra.mxu0 %v457
        %491 = vmatprep.subr.mxu0 %v460
        %492 = vmatpush1.msra.mxu0 %v459
        %493 = vmatprep.subr.mxu0 %v487
        %494 = vmatpush1.msra.mxu0 %v484
        %495 = vmatprep.subr.mxu0 0.0
        %496 = vmatpush1.msra.mxu0 0.0
        %497 = vmatprep.subr.mxu0 0.0
        %498 = vmatpush1.msra.mxu0 0.0
        %499 = vmatprep.subr.mxu0 0.0
        %500 = vmatpush1.msra.mxu0 0.0
        %501 = vmatprep.subr.mxu0 0.0
        %502 = vmatpush1.msra.mxu0 0.0
        %503 = vmatprep.subr.mxu0 0.0
        %504 = vmatpush1.msra.mxu0 0.0
        %505 = vmatprep.subr.mxu0 0.0
        %506 = vmatpush1.msra.mxu0 0.0
        %507 = vmatprep.subr.mxu0 0.0
        %508 = vmatpush1.msra.mxu0 0.0
        %509 = vmatprep.subr.mxu0 0.0
        %510 = vmatpush1.msra.mxu0 0.0
        %511 = vmatprep.subr.mxu0 0.0
        %512 = vmatpush1.msra.mxu0 0.0
        %513 = vmatprep.subr.mxu0 0.0
        %514 = vmatpush1.msra.mxu0 0.0
        %515 = vmatprep.subr.mxu0 0.0
        %516 = vmatpush1.msra.mxu0 0.0
        %517 = vmatprep.subr.mxu0 0.0
        %518 = vmatpush1.msra.mxu0 0.0
        %519 = vmatprep.subr.mxu0 0.0
        %520 = vmatpush1.msra.mxu0 0.0
        %521 = vmatprep.subr.mxu0 0.0
        %522 = vmatpush1.msra.mxu0 0.0
        %523 = vmatprep.subr.mxu0 0.0
        %524 = vmatpush1.msra.mxu0 0.0
        %525 = vmatprep.subr.mxu0 0.0
        %526 = vmatpush1.msra.mxu0 0.0
        %527 = vmatprep.subr.mxu0 0.0
        %528 = vmatpush1.msra.mxu0 0.0
        %529 = vmatprep.subr.mxu0 0.0
        %530 = vmatpush1.msra.mxu0 0.0
        %531 = vmatprep.subr.mxu0 0.0
        %532 = vmatpush1.msra.mxu0 0.0
        %533 = vmatprep.subr.mxu0 0.0
        %534 = vmatpush1.msra.mxu0 0.0
        %535 = vmatprep.subr.mxu0 0.0
        %536 = vmatpush1.msra.mxu0 0.0
        %537 = vmatprep.subr.mxu0 0.0
        %538 = vmatpush1.msra.mxu0 0.0
        %539 = vmatprep.subr.mxu0 0.0
        %540 = vmatpush1.msra.mxu0 0.0
        %541 = vmatprep.subr.mxu0 0.0
        %542 = vmatpush1.msra.mxu0 0.0
        %543 = vmatprep.subr.mxu0 0.0
        %544 = vmatpush1.msra.mxu0 0.0
        %545 = vmatprep.subr.mxu0 0.0
        %546 = vmatpush1.msra.mxu0 0.0
        %547 = vmatprep.subr.mxu0 0.0
        %548 = vmatpush1.msra.mxu0 0.0
        %549 = vmatprep.subr.mxu0 0.0
        %550 = vmatpush1.msra.mxu0 0.0
        %551 = vmatprep.subr.mxu0 0.0
        %552 = vmatpush1.msra.mxu0 0.0
        %553 = vmatprep.mubr.f32.mxu0 0.0
        %554 = vmatmul.mubr.f32.gmra.mrb[0].mxu0 %v477
        %v555 = vpop.f32.mrb[0].mxu0
        %v556 = vadd.f32 %v468, %v555
        %v557 = vpop.f32.mrb[0].mxu0
        %v558 = vadd.f32 %v472, %v557
        %559 = vmatprep.mubr.f32.mxu0 0.0
        %560 = vmatmul.mubr.f32.gmra.mrb[0].mxu0 %v480
        %v561 = vpop.f32.mrb[0].mxu0
        %v562 = vadd.f32 %v468, %v561
        %v563 = vpop.f32.mrb[0].mxu0
        %v564 = vadd.f32 %v472, %v563
        %565 = vdwg.mxu0
        %566 = vmatprep.subr.mxu0 0.0
        %567 = vmatpush1.xpose.msra.mxu0 %v556
        %568 = vmatprep.subr.mxu0 0.0
        %569 = vmatpush1.xpose.msra.mxu0 0.0
        %570 = vmatprep.subr.mxu0 0.0
        %571 = vmatpush1.xpose.msra.mxu0 0.0
        %572 = vmatprep.subr.mxu0 0.0
        %573 = vmatpush1.xpose.msra.mxu0 0.0
        %574 = vmatprep.subr.mxu0 0.0
        %575 = vmatpush1.xpose.msra.mxu0 0.0
        %576 = vmatprep.subr.mxu0 0.0
        %577 = vmatpush1.xpose.msra.mxu0 0.0
        %578 = vmatprep.subr.mxu0 0.0
        %579 = vmatpush1.xpose.msra.mxu0 0.0
        %580 = vmatprep.subr.mxu0 0.0
        %581 = vmatpush1.xpose.msra.mxu0 0.0
        %582 = vmatprep.subr.mxu0 0.0
        %583 = vmatpush1.xpose.msra.mxu0 0.0
        %584 = vmatprep.subr.mxu0 0.0
        %585 = vmatpush1.xpose.msra.mxu0 0.0
        %586 = vmatprep.subr.mxu0 0.0
        %587 = vmatpush1.xpose.msra.mxu0 0.0
        %588 = vmatprep.subr.mxu0 0.0
        %589 = vmatpush1.xpose.msra.mxu0 0.0
        %590 = vmatprep.subr.mxu0 0.0
        %591 = vmatpush1.xpose.msra.mxu0 0.0
        %592 = vmatprep.subr.mxu0 0.0
        %593 = vmatpush1.xpose.msra.mxu0 0.0
        %594 = vmatprep.subr.mxu0 0.0
        %595 = vmatpush1.xpose.msra.mxu0 0.0
        %596 = vmatprep.subr.mxu0 0.0
        %597 = vmatpush1.xpose.msra.mxu0 0.0
        %598 = vmatprep.subr.mxu0 0.0
        %599 = vmatpush1.xpose.msra.mxu0 0.0
        %600 = vmatprep.subr.mxu0 0.0
        %601 = vmatpush1.xpose.msra.mxu0 0.0
        %602 = vmatprep.subr.mxu0 0.0
        %603 = vmatpush1.xpose.msra.mxu0 0.0
        %604 = vmatprep.subr.mxu0 0.0
        %605 = vmatpush1.xpose.msra.mxu0 0.0
        %606 = vmatprep.subr.mxu0 0.0
        %607 = vmatpush1.xpose.msra.mxu0 0.0
        %608 = vmatprep.subr.mxu0 0.0
        %609 = vmatpush1.xpose.msra.mxu0 0.0
        %610 = vmatprep.subr.mxu0 0.0
        %611 = vmatpush1.xpose.msra.mxu0 0.0
        %612 = vmatprep.subr.mxu0 0.0
        %613 = vmatpush1.xpose.msra.mxu0 0.0
        %614 = vmatprep.subr.mxu0 0.0
        %615 = vmatpush1.xpose.msra.mxu0 0.0
        %616 = vmatprep.subr.mxu0 0.0
        %617 = vmatpush1.xpose.msra.mxu0 0.0
        %618 = vmatprep.subr.mxu0 0.0
        %619 = vmatpush1.xpose.msra.mxu0 0.0
        %620 = vmatprep.subr.mxu0 0.0
        %621 = vmatpush1.xpose.msra.mxu0 0.0
        %622 = vmatprep.subr.mxu0 0.0
        %623 = vmatpush1.xpose.msra.mxu0 0.0
        %624 = vmatprep.subr.mxu0 0.0
        %625 = vmatpush1.xpose.msra.mxu0 0.0
        %626 = vmatprep.subr.mxu0 0.0
        %627 = vmatpush1.xpose.msra.mxu0 0.0
        %628 = vmatprep.subr.mxu0 0.0
        %629 = vmatpush1.xpose.msra.mxu0 0.0
        %630 = vmatprep.mubr.f32.mxu0 0.0
        %631 = vmatmul.mubr.f32.gmra.mrb[0].mxu0 %v439
        %v632 = vpop.f32.mrb[0].mxu0
        %v633 = vadd.f32 0.0, %v632
        %v634 = vpop.f32.mrb[0].mxu0
        %635 = vmatprep.mubr.f32.mxu0 0.0
        %636 = vmatmul.mubr.f32.gmra.mrb[0].mxu0 %v444
        %v637 = vpop.f32.mrb[0].mxu0
        %v638 = vadd.f32 0.0, %v637
        %v639 = vpop.f32.mrb[0].mxu0
        %640 = vdwg.mxu0
        %641 = vmatprep.subr.mxu0 0.0
        %642 = vmatpush1.xpose.msra.mxu0 %v562
        %643 = vmatprep.subr.mxu0 0.0
        %644 = vmatpush1.xpose.msra.mxu0 0.0
        %645 = vmatprep.subr.mxu0 0.0
        %646 = vmatpush1.xpose.msra.mxu0 0.0
        %647 = vmatprep.subr.mxu0 0.0
        %648 = vmatpush1.xpose.msra.mxu0 0.0
        %649 = vmatprep.subr.mxu0 0.0
        %650 = vmatpush1.xpose.msra.mxu0 0.0
        %651 = vmatprep.subr.mxu0 0.0
        %652 = vmatpush1.xpose.msra.mxu0 0.0
        %653 = vmatprep.subr.mxu0 0.0
        %654 = vmatpush1.xpose.msra.mxu0 0.0
        %655 = vmatprep.subr.mxu0 0.0
        %656 = vmatpush1.xpose.msra.mxu0 0.0
        %657 = vmatprep.subr.mxu0 0.0
        %658 = vmatpush1.xpose.msra.mxu0 0.0
        %659 = vmatprep.subr.mxu0 0.0
        %660 = vmatpush1.xpose.msra.mxu0 0.0
        %661 = vmatprep.subr.mxu0 0.0
        %662 = vmatpush1.xpose.msra.mxu0 0.0
        %663 = vmatprep.subr.mxu0 0.0
        %664 = vmatpush1.xpose.msra.mxu0 0.0
        %665 = vmatprep.subr.mxu0 0.0
        %666 = vmatpush1.xpose.msra.mxu0 0.0
        %667 = vmatprep.subr.mxu0 0.0
        %668 = vmatpush1.xpose.msra.mxu0 0.0
        %669 = vmatprep.subr.mxu0 0.0
        %670 = vmatpush1.xpose.msra.mxu0 0.0
        %671 = vmatprep.subr.mxu0 0.0
        %672 = vmatpush1.xpose.msra.mxu0 0.0
        %673 = vmatprep.subr.mxu0 0.0
        %674 = vmatpush1.xpose.msra.mxu0 0.0
        %675 = vmatprep.subr.mxu0 0.0
        %676 = vmatpush1.xpose.msra.mxu0 0.0
        %677 = vmatprep.subr.mxu0 0.0
        %678 = vmatpush1.xpose.msra.mxu0 0.0
        %679 = vmatprep.subr.mxu0 0.0
        %680 = vmatpush1.xpose.msra.mxu0 0.0
        %681 = vmatprep.subr.mxu0 0.0
        %682 = vmatpush1.xpose.msra.mxu0 0.0
        %683 = vmatprep.subr.mxu0 0.0
        %684 = vmatpush1.xpose.msra.mxu0 0.0
        %685 = vmatprep.subr.mxu0 0.0
        %686 = vmatpush1.xpose.msra.mxu0 0.0
        %687 = vmatprep.subr.mxu0 0.0
        %688 = vmatpush1.xpose.msra.mxu0 0.0
        %689 = vmatprep.subr.mxu0 0.0
        %690 = vmatpush1.xpose.msra.mxu0 0.0
        %691 = vmatprep.subr.mxu0 0.0
        %692 = vmatpush1.xpose.msra.mxu0 0.0
        %693 = vmatprep.subr.mxu0 0.0
        %694 = vmatpush1.xpose.msra.mxu0 0.0
        %695 = vmatprep.subr.mxu0 0.0
        %696 = vmatpush1.xpose.msra.mxu0 0.0
        %697 = vmatprep.subr.mxu0 0.0
        %698 = vmatpush1.xpose.msra.mxu0 0.0
        %699 = vmatprep.subr.mxu0 0.0
        %700 = vmatpush1.xpose.msra.mxu0 0.0
        %701 = vmatprep.subr.mxu0 0.0
        %702 = vmatpush1.xpose.msra.mxu0 0.0
        %703 = vmatprep.subr.mxu0 0.0
        %704 = vmatpush1.xpose.msra.mxu0 0.0
        %705 = vmatprep.mubr.f32.mxu0 0.0
        %706 = vmatmul.mubr.f32.gmra.mrb[0].mxu0 %v449
        %v707 = vpop.f32.mrb[0].mxu0
        %v708 = vadd.f32 0.0, %v707
        %v709 = vpop.f32.mrb[0].mxu0
        %710 = vmatprep.mubr.f32.mxu0 0.0
        %711 = vmatmul.mubr.f32.gmra.mrb[0].mxu0 %v454
        %v712 = vpop.f32.mrb[0].mxu0
        %v713 = vadd.f32 0.0, %v712
        %v714 = vpop.f32.mrb[0].mxu0
        %715 = vdwg.mxu0
        %v716 = vmul.f32 %v633, 0.088388346
        %v717 = vmul.f32 %v638, 0.088388346
        %v718 = vmul.f32 %v708, 0.088388346
        %v719 = vmul.f32 %v713, 0.088388346
        %vm720 = vcmask 64512
        %v721 = vsel %vm720, %v716, -inf
        %v722 = vsel %vm720, %v717, -inf
        %v723 = vmax.f32 %v721, %v722
        %v724 = vrot.slane %v723, 4
        %v725 = vmax.f32 %v723, %v724
        %v726 = vrot.slane %v725, 2
        %v727 = vmax.f32 %v725, %v726
        %v728 = vrot.slane %v727, 1
        %v729 = vmax.f32 %v727, %v728
        %v730 = vsel %vm720, %v718, -inf
        %v731 = vsel %vm720, %v719, -inf
        %v732 = vmax.f32 %v730, %v731
        %v733 = vrot.slane %v732, 4
        %v734 = vmax.f32 %v732, %v733
        %v735 = vrot.slane %v734, 2
        %v736 = vmax.f32 %v734, %v735
        %v737 = vrot.slane %v736, 1
        %v738 = vmax.f32 %v736, %v737
        %v739 = vsub.f32 %v716, %v729
        %v740 = vsub.f32 %v717, %v729
        %v741 = vsub.f32 %v718, %v738
        %v742 = vsub.f32 %v719, %v738
        %v743 = vmul.f32 %v739, 1.442695
        %v744 = vpow.pop %v743
        %v745 = vmul.f32 %v740, 1.442695
        %v746 = vpow.pop %v745
        %v747 = vmul.f32 %v741, 1.442695
        %v748 = vpow.pop %v747
        %v749 = vmul.f32 %v742, 1.442695
        %v750 = vpow.pop %v749
        %v751 = vsel %vm720, %v744, 0.0
        %v752 = vsel %vm720, %v746, 0.0
        %v753 = vadd.f32 %v751, %v752
        %v754 = vrot.slane %v753, 4
        %v755 = vadd.f32 %v753, %v754
        %v756 = vrot.slane %v755, 2
        %v757 = vadd.f32 %v755, %v756
        %v758 = vrot.slane %v757, 1
        %v759 = vadd.f32 %v757, %v758
        %v760 = vsel %vm720, %v748, 0.0
        %v761 = vsel %vm720, %v750, 0.0
        %v762 = vadd.f32 %v760, %v761
        %v763 = vrot.slane %v762, 4
        %v764 = vadd.f32 %v762, %v763
        %v765 = vrot.slane %v764, 2
        %v766 = vadd.f32 %v764, %v765
        %v767 = vrot.slane %v766, 1
        %v768 = vadd.f32 %v766, %v767
        %v769 = vrcp.pop %v759
        %v770 = vrcp.pop %v768
        %v771 = vmul.f32 %v744, %v769
        %v772 = vmul.f32 %v746, %v769
        %v773 = vmul.f32 %v748, %v770
        %v774 = vmul.f32 %v750, %v770
        %v776 = vsel %vm720, %v771, 0
        %v779 = vsel %vm720, %v772, 0
        %781 = vmatprep.subr.mxu0 0.0
        %782 = vmatpush1.msra.mxu0 %v558
        %783 = vmatprep.subr.mxu0 0.0
        %784 = vmatpush1.msra.mxu0 0.0
        %785 = vmatprep.subr.mxu0 0.0
        %786 = vmatpush1.msra.mxu0 0.0
        %787 = vmatprep.subr.mxu0 0.0
        %788 = vmatpush1.msra.mxu0 0.0
        %789 = vmatprep.subr.mxu0 0.0
        %790 = vmatpush1.msra.mxu0 0.0
        %791 = vmatprep.subr.mxu0 0.0
        %792 = vmatpush1.msra.mxu0 0.0
        %793 = vmatprep.subr.mxu0 0.0
        %794 = vmatpush1.msra.mxu0 0.0
        %795 = vmatprep.subr.mxu0 0.0
        %796 = vmatpush1.msra.mxu0 0.0
        %797 = vmatprep.subr.mxu0 0.0
        %798 = vmatpush1.msra.mxu0 0.0
        %799 = vmatprep.subr.mxu0 0.0
        %800 = vmatpush1.msra.mxu0 0.0
        %801 = vmatprep.subr.mxu0 0.0
        %802 = vmatpush1.msra.mxu0 0.0
        %803 = vmatprep.subr.mxu0 0.0
        %804 = vmatpush1.msra.mxu0 0.0
        %805 = vmatprep.subr.mxu0 0.0
        %806 = vmatpush1.msra.mxu0 0.0
        %807 = vmatprep.subr.mxu0 0.0
        %808 = vmatpush1.msra.mxu0 0.0
        %809 = vmatprep.subr.mxu0 0.0
        %810 = vmatpush1.msra.mxu0 0.0
        %811 = vmatprep.subr.mxu0 0.0
        %812 = vmatpush1.msra.mxu0 0.0
        %813 = vmatprep.subr.mxu0 0.0
        %814 = vmatpush1.msra.mxu0 0.0
        %815 = vmatprep.subr.mxu0 0.0
        %816 = vmatpush1.msra.mxu0 0.0
        %817 = vmatprep.subr.mxu0 0.0
        %818 = vmatpush1.msra.mxu0 0.0
        %819 = vmatprep.subr.mxu0 0.0
        %820 = vmatpush1.msra.mxu0 0.0
        %821 = vmatprep.subr.mxu0 0.0
        %822 = vmatpush1.msra.mxu0 0.0
        %823 = vmatprep.subr.mxu0 0.0
        %824 = vmatpush1.msra.mxu0 0.0
        %825 = vmatprep.subr.mxu0 0.0
        %826 = vmatpush1.msra.mxu0 0.0
        %827 = vmatprep.subr.mxu0 0.0
        %828 = vmatpush1.msra.mxu0 0.0
        %829 = vmatprep.subr.mxu0 0.0
        %830 = vmatpush1.msra.mxu0 0.0
        %831 = vmatprep.subr.mxu0 0.0
        %832 = vmatpush1.msra.mxu0 0.0
        %833 = vmatprep.subr.mxu0 0.0
        %834 = vmatpush1.msra.mxu0 0.0
        %835 = vmatprep.subr.mxu0 0.0
        %836 = vmatpush1.msra.mxu0 0.0
        %837 = vmatprep.subr.mxu0 0.0
        %838 = vmatpush1.msra.mxu0 0.0
        %839 = vmatprep.subr.mxu0 0.0
        %840 = vmatpush1.msra.mxu0 0.0
        %841 = vmatprep.subr.mxu0 0.0
        %842 = vmatpush1.msra.mxu0 0.0
        %843 = vmatprep.subr.mxu0 0.0
        %844 = vmatpush1.msra.mxu0 0.0
        %845 = vmatprep.mubr.f32.mxu0 0.0
        %846 = vmatmul.mubr.f32.gmra.mrb[0].mxu0 %v776
        %v847 = vpop.f32.mrb[0].mxu0
        %v848 = vadd.f32 0.0, %v847
        %v849 = vpop.f32.mrb[0].mxu0
        %850 = vmatprep.mubr.f32.mxu0 0.0
        %851 = vmatmul.mubr.f32.gmra.mrb[0].mxu0 %v779
        %v852 = vpop.f32.mrb[0].mxu0
        %v853 = vadd.f32 0.0, %v852
        %v854 = vpop.f32.mrb[0].mxu0
        %855 = vdwg.mxu0
        %v857 = vsel %vm720, %v773, 0
        %v860 = vsel %vm720, %v774, 0
        %862 = vmatprep.subr.mxu0 0.0
        %863 = vmatpush1.msra.mxu0 %v564
        %864 = vmatprep.subr.mxu0 0.0
        %865 = vmatpush1.msra.mxu0 0.0
        %866 = vmatprep.subr.mxu0 0.0
        %867 = vmatpush1.msra.mxu0 0.0
        %868 = vmatprep.subr.mxu0 0.0
        %869 = vmatpush1.msra.mxu0 0.0
        %870 = vmatprep.subr.mxu0 0.0
        %871 = vmatpush1.msra.mxu0 0.0
        %872 = vmatprep.subr.mxu0 0.0
        %873 = vmatpush1.msra.mxu0 0.0
        %874 = vmatprep.subr.mxu0 0.0
        %875 = vmatpush1.msra.mxu0 0.0
        %876 = vmatprep.subr.mxu0 0.0
        %877 = vmatpush1.msra.mxu0 0.0
        %878 = vmatprep.subr.mxu0 0.0
        %879 = vmatpush1.msra.mxu0 0.0
        %880 = vmatprep.subr.mxu0 0.0
        %881 = vmatpush1.msra.mxu0 0.0
        %882 = vmatprep.subr.mxu0 0.0
        %883 = vmatpush1.msra.mxu0 0.0
        %884 = vmatprep.subr.mxu0 0.0
        %885 = vmatpush1.msra.mxu0 0.0
        %886 = vmatprep.subr.mxu0 0.0
        %887 = vmatpush1.msra.mxu0 0.0
        %888 = vmatprep.subr.mxu0 0.0
        %889 = vmatpush1.msra.mxu0 0.0
        %890 = vmatprep.subr.mxu0 0.0
        %891 = vmatpush1.msra.mxu0 0.0
        %892 = vmatprep.subr.mxu0 0.0
        %893 = vmatpush1.msra.mxu0 0.0
        %894 = vmatprep.subr.mxu0 0.0
        %895 = vmatpush1.msra.mxu0 0.0
        %896 = vmatprep.subr.mxu0 0.0
        %897 = vmatpush1.msra.mxu0 0.0
        %898 = vmatprep.subr.mxu0 0.0
        %899 = vmatpush1.msra.mxu0 0.0
        %900 = vmatprep.subr.mxu0 0.0
        %901 = vmatpush1.msra.mxu0 0.0
        %902 = vmatprep.subr.mxu0 0.0
        %903 = vmatpush1.msra.mxu0 0.0
        %904 = vmatprep.subr.mxu0 0.0
        %905 = vmatpush1.msra.mxu0 0.0
        %906 = vmatprep.subr.mxu0 0.0
        %907 = vmatpush1.msra.mxu0 0.0
        %908 = vmatprep.subr.mxu0 0.0
        %909 = vmatpush1.msra.mxu0 0.0
        %910 = vmatprep.subr.mxu0 0.0
        %911 = vmatpush1.msra.mxu0 0.0
        %912 = vmatprep.subr.mxu0 0.0
        %913 = vmatpush1.msra.mxu0 0.0
        %914 = vmatprep.subr.mxu0 0.0
        %915 = vmatpush1.msra.mxu0 0.0
        %916 = vmatprep.subr.mxu0 0.0
        %917 = vmatpush1.msra.mxu0 0.0
        %918 = vmatprep.subr.mxu0 0.0
        %919 = vmatpush1.msra.mxu0 0.0
        %920 = vmatprep.subr.mxu0 0.0
        %921 = vmatpush1.msra.mxu0 0.0
        %922 = vmatprep.subr.mxu0 0.0
        %923 = vmatpush1.msra.mxu0 0.0
        %924 = vmatprep.subr.mxu0 0.0
        %925 = vmatpush1.msra.mxu0 0.0
        %926 = vmatprep.mubr.f32.mxu0 0.0
        %927 = vmatmul.mubr.f32.gmra.mrb[0].mxu0 %v857
        %v928 = vpop.f32.mrb[0].mxu0
        %v929 = vadd.f32 0.0, %v928
        %v930 = vpop.f32.mrb[0].mxu0
        %931 = vmatprep.mubr.f32.mxu0 0.0
        %932 = vmatmul.mubr.f32.gmra.mrb[0].mxu0 %v860
        %v933 = vpop.f32.mrb[0].mxu0
        %v934 = vadd.f32 0.0, %v933
        %v935 = vpop.f32.mrb[0].mxu0
        %936 = vdwg.mxu0
        %937 = vst [vmem:[%s339] sm:$0xff] %v848
        %938 = vst [vmem:[%s339 + $0x8] sm:$0xff] %v853
        %939 = vst [vmem:[%s339 + $0x10] sm:$0xff] %v929
        %940 = vst [vmem:[%s339 + $0x18] sm:$0xff] %v934
        %s941 = sand.u32 %s171, 1
        %s942 = scalar_lea.sflag [#allocation4], %s941
        %s943 = sand.u32 %s171, 1
        %s944 = smul.addr %s943, 32
        %s945 = scalar_lea.vmem [#allocation10], %s944
        // Predicated region
        $region61: #{attention_head_forward.1} parent=43 // pred_check
          %p946 = pneg %p181
        $region62: #{attention_head_forward.1} parent=43 // pred_check_branch
          %948 = sbr.rel (%p946) target = $region64
        $region63: #{attention_head_forward.1} parent=43 // pred_region
          %s949 = smul.u32 2, %s27
          %s951 = ssub.s32 512, 512
          %952 = vsyncadd %s942, %s951
          %s953 = smul.addr %s949, 2
          %s954 = smul.addr %s953, 128
          %s955 = scalar_lea.hbm %s6, %s954
          %s956 = sshll.u32 %s945, 4
          %s957 = int_to_ptr.vmem [resolvable:$true] %s956
          %962 = dma.vmem_to_hbm [thread:$0]  %s957, 512, %s955, %s942, 128, 128, 8
        $region64: #{attention_head_forward.1} parent=43 // pred_fallthru
          _
      $region44: #{attention_head_forward.1} parent=5 // pred_fallthru
        _
      %p963 = scmp.le.s32.totalorder 2, %s22
      // Predicated region
      $region65: #{attention_head_forward.1} parent=5 // pred_check
        %p964 = pneg %p963
      $region66: #{attention_head_forward.1} parent=5 // pred_check_branch
        %966 = sbr.rel (%p964) target = $region68
      $region67: #{attention_head_forward.1} parent=5 // pred_region
        %s967 = ssub.s32 %s22, 2
        // Predicated region
        $region69: #{attention_head_forward.1} parent=67 // pred_check
          %p968 = pneg %p187
        $region70: #{attention_head_forward.1} parent=67 // pred_check_branch
          %970 = sbr.rel (%p968) target = $region72
        $region71: #{attention_head_forward.1} parent=67 // pred_region
          %s971 = sand.u32 %s172, 1
          %s972 = scalar_lea.sflag [#allocation4], %s971
          %s973 = sand.u32 %s172, 1
          %s974 = smul.addr %s973, 32
          %s975 = scalar_lea.vmem [#allocation10], %s974
          %976 = dma.done %s972, 512
        $region72: #{attention_head_forward.1} parent=67 // pred_fallthru
          _
      $region68: #{attention_head_forward.1} parent=5 // pred_fallthru
        _
    $region6: #{attention_head_forward.1} parent=1 // loop_footer
      %s26 = sadd.s32 1, %s22
    $region7: #{attention_head_forward.1} parent=1 // loop_footer_branch
      %21 = sbr.rel target = $region3
    $region8: #{attention_head_forward.1} parent=1 // loop_exit
      _
    %977 = vsyncpa [#allocation3], 1
    %s978 = scalar_lea.sflag [#allocation3], 1
    %979 = vsyncpa %s978, 1
    %980 = vsyncpa [#allocation6], 1
    %s981 = scalar_lea.sflag [#allocation6], 1
    %982 = vsyncpa %s981, 1
    %983 = vsyncpa [#allocation9], 1
    %984 = vsyncpa [#allocation4], 1
    %s985 = scalar_lea.sflag [#allocation4], 1
    %986 = vsyncpa %s985, 1

</llo_original>
